<compile_context>
chip_gen: v6e
topology: v6e:2x2x1
jax: 0.10.0
libtpu: 0.0.40
codegen_flags: <defaults>
</compile_context>

<pallas_src>
import functools

import jax
import jax.numpy as jnp
from jax.experimental import pallas as pl
from jax.experimental.pallas import tpu as pltpu

H = 20          # hidden width of fc1 / input width of fc2
TN = 512        # lane-axis tile for the large-batch (gridded) path


def mlp_kernel(xt_ref, params_ref, o_ref):
    """One fused MLP tile.

    xt:     (1, N)  batch on lanes
    params: (H, 4)  columns = [fc1.weight, fc1.bias, fc2.weight^T, fc2.bias]
    out:    (1, N)
    """
    p = params_ref[...]                    # (H, 4) single tiny VMEM load
    w1 = p[:, 0:1]                         # (H, 1)
    b1 = p[:, 1:2]                         # (H, 1)
    w2 = p[:, 2:3]                         # (H, 1)
    b2 = p[0:1, 3:4]                       # (1, 1)  (bias replicated per row)
    # hidden (H, N): outer product via VPU broadcast multiply, tanh on EUP.
    h = jnp.tanh(w1 * xt_ref[...] + b1)
    # output (1, N): weighted sublane reduce (XLU) + bias.
    y = jnp.sum(w2 * h, axis=0, keepdims=True) + b2
    o_ref[...] = y.astype(o_ref.dtype)


def pack_params(fc1_w, fc1_b, fc2_w, fc2_b):
    """Pack PyTorch-layout Linear params into one (H, 4) f32 slab."""
    w1 = fc1_w.reshape(H, 1)                               # fc1.weight (20, 1)
    b1 = fc1_b.reshape(H, 1)                               # fc1.bias   (20,)
    w2 = fc2_w.reshape(1, H).T                             # fc2.weight (1, 20) -> (20, 1)
    b2 = jnp.full((H, 1), fc2_b.reshape(())[None][0])      # replicate scalar bias
    return jnp.concatenate([w1, b1, w2, b2], axis=1).astype(jnp.float32)


def _cost(n):
    return pl.CostEstimate(
        flops=4 * H * n,            # 2 mul + 2 add per hidden element (approx)
        transcendentals=H * n,      # tanh
        bytes_accessed=(2 * n + 4 * H) * 4,
    )


def _forward_small(xt, params, n):
    """Gridless single-call path: everything is one whole-array VMEM block."""
    vmem = pl.BlockSpec(memory_space=pltpu.MemorySpace.VMEM)
    return pl.pallas_call(
        mlp_kernel,
        out_shape=jax.ShapeDtypeStruct((1, n), xt.dtype),
        in_specs=[vmem, vmem],
        out_specs=vmem,
        cost_estimate=_cost(n),
    )(xt, params)


def _forward_tiled(xt, params, n):
    """Lane-axis tiled path for large batches (weights VMEM-resident)."""
    n_pad = pl.cdiv(n, TN) * TN
    if n_pad != n:
        xt = jnp.pad(xt, ((0, 0), (0, n_pad - n)))
    grid = (n_pad // TN,)
    out = pl.pallas_call(
        mlp_kernel,
        out_shape=jax.ShapeDtypeStruct((1, n_pad), xt.dtype),
        grid_spec=pl.GridSpec(
            grid=grid,
            in_specs=[
                pl.BlockSpec((1, TN), lambda i: (0, i)),    # x: marches along lanes
                pl.BlockSpec((H, 4), lambda i: (0, 0)),     # params: grid-invariant
            ],
            out_specs=pl.BlockSpec((1, TN), lambda i: (0, i)),
        ),
        compiler_params=pltpu.CompilerParams(
            dimension_semantics=("parallel",),               # v7x: 2 TCs split N
            vmem_limit_bytes=32 * 1024 * 1024,               # sized for v7x headroom
        ),
        cost_estimate=_cost(n_pad),
    )(xt, params)
    return out[:, :n]


@functools.partial(jax.jit, static_argnames=())
def simple_nn_forward(x, params):
    """x: (N, 1) f32, params: (H, 4) packed slab. Returns (N, 1)."""
    n = x.shape[0]
    xt = x.reshape(1, n)                   # free reshape: size-1 dim move
    if n <= TN:
        out_t = _forward_small(xt, params, n)
    else:
        out_t = _forward_tiled(xt, params, n)
    return out_t.reshape(n, 1)


def init_params(key, d_in=1, d_hidden=H, d_out=1):
    # PyTorch nn.Linear default init: U(-1/sqrt(fan_in), 1/sqrt(fan_in)),
    # weights stored in PyTorch (out_features, in_features) layout.
    k1, k2, k3, k4 = jax.random.split(key, 4)
    bound1 = 1.0 / jnp.sqrt(jnp.array(d_in, jnp.float32))
    bound2 = 1.0 / jnp.sqrt(jnp.array(d_hidden, jnp.float32))
    fc1_w = jax.random.uniform(k1, (d_hidden, d_in), jnp.float32, -bound1, bound1)
    fc1_b = jax.random.uniform(k2, (d_hidden,), jnp.float32, -bound1, bound1)
    fc2_w = jax.random.uniform(k3, (d_out, d_hidden), jnp.float32, -bound2, bound2)
    fc2_b = jax.random.uniform(k4, (d_out,), jnp.float32, -bound2, bound2)
    return fc1_w, fc1_b, fc2_w, fc2_b


def reference(x, fc1_w, fc1_b, fc2_w, fc2_b):
    # PyTorch semantics: y = tanh(x @ W1^T + b1) @ W2^T + b2
    return jnp.tanh(x @ fc1_w.T + fc1_b) @ fc2_w.T + fc2_b


if __name__ == "__main__":
    key = jax.random.PRNGKey(0)
    fc1_w, fc1_b, fc2_w, fc2_b = init_params(key)
    params = pack_params(fc1_w, fc1_b, fc2_w, fc2_b)

    # Spec-sized input (same as the PyTorch script): linspace(0, 1, 50).view(-1, 1)
    x_small = jnp.linspace(0.0, 1.0, 50, dtype=jnp.float32).reshape(-1, 1)
    out_small = jax.block_until_ready(simple_nn_forward(x_small, params))
    ref_small = reference(x_small, fc1_w, fc1_b, fc2_w, fc2_b)
    assert out_small.shape == (50, 1)
    assert jnp.allclose(out_small, ref_small, atol=1e-5, rtol=1e-5)

    # Exercise the tiled (large-batch) path as well: N=600 -> 2 lane tiles of 512.
    x_big = jnp.linspace(-2.0, 2.0, 600, dtype=jnp.float32).reshape(-1, 1)
    out_big = jax.block_until_ready(simple_nn_forward(x_big, params))
    ref_big = reference(x_big, fc1_w, fc1_b, fc2_w, fc2_b)
    assert out_big.shape == (600, 1)
    assert jnp.allclose(out_big, ref_big, atol=1e-5, rtol=1e-5)

    print("KERNEL_OK")
</pallas_src>

<mosaic_0001>
module attributes {stable_mosaic.version = 11 : i64} {
  func.func @mlp_kernel(%arg0: memref<1x50xf32, #tpu.memory_space<vmem>>, %arg1: memref<20x4xf32, #tpu.memory_space<vmem>>, %arg2: memref<1x50xf32, #tpu.memory_space<vmem>>) attributes {dimension_semantics = [], scalar_prefetch = 0 : i64, scratch_operands = 0 : i64, tpu.core_type = #tpu.core_type<tc>} {
    %c0 = arith.constant 0 : index
    %c0_0 = arith.constant 0 : index
    %0 = vector.load %arg1[%c0, %c0_0] : memref<20x4xf32, #tpu.memory_space<vmem>>, vector<20x4xf32>
    %1 = vector.extract_strided_slice %0 {offsets = [0, 0], sizes = [20, 1], strides = [1, 1]} : vector<20x4xf32> to vector<20x1xf32>
    %2 = vector.extract_strided_slice %0 {offsets = [0, 1], sizes = [20, 1], strides = [1, 1]} : vector<20x4xf32> to vector<20x1xf32>
    %3 = vector.extract_strided_slice %0 {offsets = [0, 2], sizes = [20, 1], strides = [1, 1]} : vector<20x4xf32> to vector<20x1xf32>
    %4 = vector.extract_strided_slice %0 {offsets = [0, 3], sizes = [1, 1], strides = [1, 1]} : vector<20x4xf32> to vector<1x1xf32>
    %c0_1 = arith.constant 0 : index
    %c0_2 = arith.constant 0 : index
    %5 = vector.load %arg0[%c0_1, %c0_2] : memref<1x50xf32, #tpu.memory_space<vmem>>, vector<1x50xf32>
    %6 = vector.broadcast %1 : vector<20x1xf32> to vector<20x50xf32>
    %7 = vector.broadcast %5 : vector<1x50xf32> to vector<20x50xf32>
    %8 = arith.mulf %6, %7 : vector<20x50xf32>
    %9 = vector.broadcast %2 : vector<20x1xf32> to vector<20x50xf32>
    %10 = arith.addf %8, %9 : vector<20x50xf32>
    %11 = math.tanh %10 : vector<20x50xf32>
    %12 = vector.broadcast %3 : vector<20x1xf32> to vector<20x50xf32>
    %13 = arith.mulf %12, %11 : vector<20x50xf32>
    %cst = arith.constant dense<0.000000e+00> : vector<50xf32>
    %14 = vector.multi_reduction <add>, %13, %cst [0] : vector<20x50xf32> to vector<50xf32>
    %15 = vector.shape_cast %14 : vector<50xf32> to vector<1x50xf32>
    %16 = vector.broadcast %4 : vector<1x1xf32> to vector<1x50xf32>
    %17 = arith.addf %15, %16 : vector<1x50xf32>
    %c0_3 = arith.constant 0 : index
    %c0_4 = arith.constant 0 : index
    %18 = vector.load %arg2[%c0_3, %c0_4] : memref<1x50xf32, #tpu.memory_space<vmem>>, vector<1x50xf32>
    tpu.vector_store %arg2[%c0_3, %c0_4], %17 {strides = array<i32>} : memref<1x50xf32, #tpu.memory_space<vmem>>, vector<1x50xf32>,
    return
  }
}

</mosaic_0001>

<llo_original>
// kernel: simple_nn_forward.1
$region0: #{simple_nn_forward.1}
  #allocation0 [shape = 'u32[]', space=smem, size = 0x4, offset = 0x4, fixed_abs, tag = 'smem constant byte address 0x4 - core index']
  #allocation1 [shape = 'u32[144,128]{1,0:T(1,128)}', space=vmem, size = 0x12000, scoped, tag = 'internal scratch']
  %s0 = inlined_call_operand.vmem [shape: f32[1,50], index: 0, kind: input, shape index: {}]
  %s1 = inlined_call_operand.vmem [shape: f32[20,4], index: 1, kind: input, shape index: {}]
  %s2 = inlined_call_operand.hbm [shape: f32[1,50], index: 2, kind: output, shape index: {}]
  %s3 = sld [smem:[#allocation0]]
  $region18: #{simple_nn_forward.1} parent=0
    _
  %s5 = ssub.s32 1, %s3
  %s6 = scalar_select 0, %s5, %s3
  $region1: #{simple_nn_forward.1} parent=0
    #allocation2 [shape = 'u8[512]{0}', space=vmem, size = 0x400, scoped, tag = 'output window, operand 0, single buffered']
    #allocation3 [shape = 's32[1]{0}', space=sflag, size = 0x4, scoped, tag = 'scoped memory for simple_nn_forward.1']
    %7 = vsyncpa [#allocation3], 0
    // Predicated region
    $region2: #{simple_nn_forward.1} parent=1 // pred_check
      _
    $region3: #{simple_nn_forward.1} parent=1 // pred_check_branch
      %9 = sbr.rel (0) target = $region5
    $region4: #{simple_nn_forward.1} parent=1 // pred_region
      _
    $region5: #{simple_nn_forward.1} parent=1 // pred_fallthru
      _
    // Predicated region
    $region6: #{simple_nn_forward.1} parent=1 // pred_check
      _
    $region7: #{simple_nn_forward.1} parent=1 // pred_check_branch
      %11 = sbr.rel (0) target = $region9
    $region8: #{simple_nn_forward.1} parent=1 // pred_region
      _
    $region9: #{simple_nn_forward.1} parent=1 // pred_fallthru
      _
    %v12 = vld [vmem:[%s1] sm:$0xff]
    %v13 = vld [vmem:[%s1 + $0x8] sm:$0xff]
    %v14 = vld [vmem:[%s1 + $0x10] sm:$0xf]
    %v15 = vld [vmem:[%s0] sm:$0x1]
    %17 = vset.pattern.permute.xlu0 0
    %18 = vperm.xlu0 %17, %v12
    %v19 = vpop.permute.xlu0 %18
    %22 = vset.pattern.permute.xlu0 0
    %23 = vperm.xlu0 %22, %v13
    %v24 = vpop.permute.xlu0 %23
    %27 = vset.pattern.permute.xlu0 0
    %28 = vperm.xlu0 %27, %v14
    %v29 = vpop.permute.xlu0 %28
    %v32 = vlaneseq
    %v33 = vshrl.u32 %v32, 7
    %v34 = vsub.s32 0, %v33
    %v35 = vrot.slane %v15, %v34
    %v37 = vmul.f32 %v19, %v35
    %v38 = vmul.f32 %v24, %v35
    %v39 = vmul.f32 %v29, %v35
    %40 = vset.pattern.permute.xlu0 1
    %41 = vperm.xlu0 %40, %v12
    %v42 = vpop.permute.xlu0 %41
    %44 = vset.pattern.permute.xlu0 1
    %45 = vperm.xlu0 %44, %v13
    %v46 = vpop.permute.xlu0 %45
    %48 = vset.pattern.permute.xlu0 1
    %49 = vperm.xlu0 %48, %v14
    %v50 = vpop.permute.xlu0 %49
    %v52 = vadd.f32 %v37, %v42
    %v53 = vadd.f32 %v38, %v46
    %v54 = vadd.f32 %v39, %v50
    %v55 = vtanh.pop %v52
    %v56 = vtanh.pop %v53
    %v57 = vtanh.pop %v54
    %58 = vset.pattern.permute.xlu0 2
    %59 = vperm.xlu0 %58, %v12
    %v60 = vpop.permute.xlu0 %59
    %62 = vset.pattern.permute.xlu0 2
    %63 = vperm.xlu0 %62, %v13
    %v64 = vpop.permute.xlu0 %63
    %66 = vset.pattern.permute.xlu0 2
    %67 = vperm.xlu0 %66, %v14
    %v68 = vpop.permute.xlu0 %67
    %v70 = vmul.f32 %v60, %v55
    %v71 = vmul.f32 %v64, %v56
    %v72 = vmul.f32 %v68, %v57
    %vm73 = vcmask 408576
    %v74 = vsel %vm73, %v70, 0.0
    %v75 = vsel %vm73, %v71, 0.0
    %v76 = vadd.f32 %v74, %v75
    %vm77 = vcmask 404480
    %v78 = vsel %vm77, %v72, 0.0
    %v79 = vadd.f32 %v76, %v78
    %v80 = vrot.slane %v79, 4
    %v81 = vadd.f32 %v79, %v80
    %v82 = vrot.slane %v81, 2
    %v83 = vadd.f32 %v81, %v82
    %v84 = vrot.slane %v83, 1
    %v85 = vadd.f32 %v83, %v84
    %86 = vset.pattern.permute.xlu0 3
    %87 = vperm.xlu0 %86, %v12
    %v88 = vpop.permute.xlu0 %87
    %v90 = vadd.f32 %v85, %v88
    %vm91 = vcmask 401408
    %92 = vst.msk [vmem:[#allocation2] sm:$0x1] %vm91, %v90
    // Predicated region
    $region10: #{simple_nn_forward.1} parent=1 // pred_check
      _
    $region11: #{simple_nn_forward.1} parent=1 // pred_check_branch
      %94 = sbr.rel (0) target = $region13
    $region12: #{simple_nn_forward.1} parent=1 // pred_region
      %s96 = ssub.s32 16, 16
      %97 = vsyncadd [#allocation3], %s96
      %s99 = sshll.u32 [#allocation2], 4
      %s100 = int_to_ptr.vmem [resolvable:$true] %s99
      %102 = dma.vmem_to_hbm [thread:$0]  %s100, 16, %s2, [#allocation3]
    $region13: #{simple_nn_forward.1} parent=1 // pred_fallthru
      _
    // Predicated region
    $region14: #{simple_nn_forward.1} parent=1 // pred_check
      _
    $region15: #{simple_nn_forward.1} parent=1 // pred_check_branch
      %104 = sbr.rel (0) target = $region17
    $region16: #{simple_nn_forward.1} parent=1 // pred_region
      %105 = dma.done [#allocation3], 16
    $region17: #{simple_nn_forward.1} parent=1 // pred_fallthru
      _
    %106 = vsyncpa [#allocation3], 1

</llo_original>
